<compile_context>
chip_gen: v5e
topology: v5e:2x2
jax: 0.10.0
libtpu: 0.0.40
codegen_flags: <defaults>
</compile_context>

<pallas_src>
import functools

import jax
import jax.numpy as jnp
from jax.experimental import pallas as pl
from jax.experimental.pallas import tpu as pltpu


def _fused_resnet_layer_kernel(x_ref, w_ref, b_ref, o_ref):
    """Fused L residual blocks on one lane-dense activation tile.

    x_ref:  (C, tm)    tile of activations, pixels on the lane axis
    w_ref:  (L, C, C)  folded conv*BN-scale weights (Cout, Cin), VMEM-resident
    b_ref:  (L, C, 1)  folded BN biases
    o_ref:  (C, tm)
    """
    L, C, _ = w_ref.shape
    x = x_ref[...].astype(jnp.float32)

    # L is a small static Python int -> unrolled loop with static ref slices.
    for l in range(L):
        w = w_ref[l]          # (C, C)
        b = b_ref[l]          # (C, 1) -> lane-broadcast
        if C <= 32:
            # Tiny channel count: skip the MXU, do C broadcast-FMAs on the VPU.
            conv = jnp.zeros_like(x)
            for cin in range(C):
                conv = conv + w[:, cin:cin + 1] * x[cin:cin + 1, :]
        else:
            conv = jnp.dot(w, x, preferred_element_type=jnp.float32)
        # residue = conv + bias (BN scale already folded into w); y = relu(x + residue)
        x = jnp.maximum(x + conv + b, 0.0)

    o_ref[...] = x.astype(o_ref.dtype)


def _default_tm(M):
    """Pick a large, lane-aligned pixel tile; >=2 tiles when M allows (v7x 2 TCs)."""
    half = (M + 1) // 2
    tm = ((half + 127) // 128) * 128
    return max(128, min(2048, tm))


def _run_fused_layer(x2d, w_stack, b_stack, *, tm):
    C, M_pad = x2d.shape
    L = w_stack.shape[0]
    itemsize = jnp.dtype(x2d.dtype).itemsize

    # Rough VMEM budget: double-buffered in/out activation tiles + resident
    # (double-buffered) weights/biases. Cap well below v7x's 64 MiB physical.
    need = itemsize * 4 * C * tm + 4 * (2 * L * C * C + 2 * L * C)
    vmem_limit = int(min(48 << 20, max(32 << 20, 2 * need)))

    return pl.pallas_call(
        _fused_resnet_layer_kernel,
        out_shape=jax.ShapeDtypeStruct((C, M_pad), x2d.dtype),
        grid_spec=pltpu.PrefetchScalarGridSpec(
            num_scalar_prefetch=0,
            grid=(pl.cdiv(M_pad, tm),),
            in_specs=[
                pl.BlockSpec((C, tm), lambda i: (0, i)),        # activations
                pl.BlockSpec((L, C, C), lambda i: (0, 0, 0)),   # all weights, resident
                pl.BlockSpec((L, C, 1), lambda i: (0, 0, 0)),   # all biases, resident
            ],
            out_specs=pl.BlockSpec((C, tm), lambda i: (0, i)),
        ),
        compiler_params=pltpu.CompilerParams(
            dimension_semantics=("parallel",),
            vmem_limit_bytes=vmem_limit,
        ),
    )(x2d, w_stack, b_stack)


@functools.partial(jax.jit, static_argnames=("tm",))
def resnet_layer_forward(x_nchw, w_stack, b_stack, *, tm=None):
    """x_nchw: (N, C, H, W) f32. w_stack: (L, C, C). b_stack: (L, C, 1)."""
    N, C, H, W = x_nchw.shape
    M = N * H * W
    if tm is None:
        tm = _default_tm(M)

    # NCHW -> (C, N*H*W): channels on sublanes, pixels lane-dense.
    x2d = jnp.transpose(x_nchw, (1, 0, 2, 3)).reshape(C, M)

    # Pad the pixel axis so no tail pixels are dropped (padded pixels are
    # computed independently and sliced off; they cannot affect real pixels).
    M_pad = pl.cdiv(M, tm) * tm
    if M_pad != M:
        x2d = jnp.pad(x2d, ((0, 0), (0, M_pad - M)))

    out2d = _run_fused_layer(x2d, w_stack, b_stack, tm=tm)
    out2d = out2d[:, :M]

    # (C, N*H*W) -> NCHW
    return jnp.transpose(out2d.reshape(C, N, H, W), (1, 0, 2, 3))


def init_params(key, channels, layer_depth, eps=1e-5):
    """Deterministic synthetic params for `layer_depth` ResidualBlocks.

    Returns (w_stack, b_stack):
      w_stack: (L, C, C)  conv1x1 weight (Cout, Cin) with BN scale folded in
      b_stack: (L, C, 1)  folded BN bias
    """
    ws, bs = [], []
    for _ in range(layer_depth):
        key, kw, kg, kb, km, kv = jax.random.split(key, 6)
        # Conv1x1 weight, PyTorch layout (Cout, Cin) = weight[:, :, 0, 0]
        w = jax.random.normal(kw, (channels, channels), jnp.float32) * 0.1
        gamma = 1.0 + 0.1 * jax.random.normal(kg, (channels,), jnp.float32)
        beta = 0.1 * jax.random.normal(kb, (channels,), jnp.float32)
        run_mean = 0.1 * jax.random.normal(km, (channels,), jnp.float32)
        run_var = jnp.abs(jax.random.normal(kv, (channels,), jnp.float32)) + 0.5
        scale = gamma / jnp.sqrt(run_var + eps)          # (Cout,)
        ws.append(w * scale[:, None])                    # fold BN scale into W
        bs.append((beta - run_mean * scale)[:, None])    # (Cout, 1)
    return jnp.stack(ws, axis=0), jnp.stack(bs, axis=0)


def reference_forward(x_nchw, w_stack, b_stack):
    """Pure-JAX reference with identical (folded) math."""
    x = x_nchw
    for l in range(w_stack.shape[0]):
        conv = jnp.einsum("nchw,dc->ndhw", x, w_stack[l])     # d=Cout, c=Cin
        bias = b_stack[l][None, :, :, None]                   # (1, C, 1, 1)
        x = jnp.maximum(x + conv + bias, 0.0)
    return x


if __name__ == "__main__":
    N, C, H, W = 2, 8, 16, 16
    layer_depth = 2

    key = jax.random.PRNGKey(0)
    kx, kp = jax.random.split(key)
    x = jax.random.normal(kx, (N, C, H, W), jnp.float32)
    w_stack, b_stack = init_params(kp, C, layer_depth)

    out = resnet_layer_forward(x, w_stack, b_stack)
    out = jax.block_until_ready(out)

    ref = reference_forward(x, w_stack, b_stack)
    assert out.shape == (N, C, H, W)
    assert jnp.allclose(out, ref, atol=1e-5, rtol=1e-5), "mismatch vs reference"

    print("KERNEL_OK")
</pallas_src>

<mosaic_0001>
module attributes {stable_mosaic.version = 11 : i64} {
  func.func @_fused_resnet_layer_kernel(%arg0: i32, %arg1: memref<8x256xf32, #tpu.memory_space<vmem>>, %arg2: memref<2x8x8xf32, #tpu.memory_space<vmem>>, %arg3: memref<2x8x1xf32, #tpu.memory_space<vmem>>, %arg4: memref<8x256xf32, #tpu.memory_space<vmem>>) attributes {dimension_semantics = [#tpu.dimension_semantics<parallel>], iteration_bounds = array<i64: 2>, scalar_prefetch = 0 : i64, scratch_operands = 0 : i64, tpu.core_type = #tpu.core_type<tc>, window_params = [{transform_indices = @transform_0, window_bounds = array<i64: 8, 256>}, {pipeline_mode = #tpu.pipeline_mode<synchronous>, transform_indices = @transform_1, window_bounds = array<i64: 2, 8, 8>}, {pipeline_mode = #tpu.pipeline_mode<synchronous>, transform_indices = @transform_2, window_bounds = array<i64: 2, 8, 1>}, {transform_indices = @transform_3, window_bounds = array<i64: 8, 256>}]} {
    %c0 = arith.constant 0 : index
    %c0_0 = arith.constant 0 : index
    %0 = vector.load %arg1[%c0, %c0_0] : memref<8x256xf32, #tpu.memory_space<vmem>>, vector<8x256xf32>
    %c0_1 = arith.constant 0 : index
    %c0_2 = arith.constant 0 : index
    %c0_3 = arith.constant 0 : index
    %1 = vector.load %arg2[%c0_1, %c0_2, %c0_3] : memref<2x8x8xf32, #tpu.memory_space<vmem>>, vector<1x8x8xf32>
    %2 = vector.shape_cast %1 : vector<1x8x8xf32> to vector<8x8xf32>
    %c0_4 = arith.constant 0 : index
    %c0_5 = arith.constant 0 : index
    %c0_6 = arith.constant 0 : index
    %3 = vector.load %arg3[%c0_4, %c0_5, %c0_6] : memref<2x8x1xf32, #tpu.memory_space<vmem>>, vector<1x8x1xf32>
    %4 = vector.shape_cast %3 : vector<1x8x1xf32> to vector<8x1xf32>
    %cst = arith.constant 0.000000e+00 : f32
    %5 = vector.broadcast %cst : f32 to vector<8x256xf32>
    %6 = vector.extract_strided_slice %2 {offsets = [0, 0], sizes = [8, 1], strides = [1, 1]} : vector<8x8xf32> to vector<8x1xf32>
    %7 = vector.extract_strided_slice %0 {offsets = [0, 0], sizes = [1, 256], strides = [1, 1]} : vector<8x256xf32> to vector<1x256xf32>
    %8 = vector.broadcast %6 : vector<8x1xf32> to vector<8x256xf32>
    %9 = vector.broadcast %7 : vector<1x256xf32> to vector<8x256xf32>
    %10 = arith.mulf %8, %9 : vector<8x256xf32>
    %11 = arith.addf %5, %10 : vector<8x256xf32>
    %12 = vector.extract_strided_slice %2 {offsets = [0, 1], sizes = [8, 1], strides = [1, 1]} : vector<8x8xf32> to vector<8x1xf32>
    %13 = vector.extract_strided_slice %0 {offsets = [1, 0], sizes = [1, 256], strides = [1, 1]} : vector<8x256xf32> to vector<1x256xf32>
    %14 = vector.broadcast %12 : vector<8x1xf32> to vector<8x256xf32>
    %15 = vector.broadcast %13 : vector<1x256xf32> to vector<8x256xf32>
    %16 = arith.mulf %14, %15 : vector<8x256xf32>
    %17 = arith.addf %11, %16 : vector<8x256xf32>
    %18 = vector.extract_strided_slice %2 {offsets = [0, 2], sizes = [8, 1], strides = [1, 1]} : vector<8x8xf32> to vector<8x1xf32>
    %19 = vector.extract_strided_slice %0 {offsets = [2, 0], sizes = [1, 256], strides = [1, 1]} : vector<8x256xf32> to vector<1x256xf32>
    %20 = vector.broadcast %18 : vector<8x1xf32> to vector<8x256xf32>
    %21 = vector.broadcast %19 : vector<1x256xf32> to vector<8x256xf32>
    %22 = arith.mulf %20, %21 : vector<8x256xf32>
    %23 = arith.addf %17, %22 : vector<8x256xf32>
    %24 = vector.extract_strided_slice %2 {offsets = [0, 3], sizes = [8, 1], strides = [1, 1]} : vector<8x8xf32> to vector<8x1xf32>
    %25 = vector.extract_strided_slice %0 {offsets = [3, 0], sizes = [1, 256], strides = [1, 1]} : vector<8x256xf32> to vector<1x256xf32>
    %26 = vector.broadcast %24 : vector<8x1xf32> to vector<8x256xf32>
    %27 = vector.broadcast %25 : vector<1x256xf32> to vector<8x256xf32>
    %28 = arith.mulf %26, %27 : vector<8x256xf32>
    %29 = arith.addf %23, %28 : vector<8x256xf32>
    %30 = vector.extract_strided_slice %2 {offsets = [0, 4], sizes = [8, 1], strides = [1, 1]} : vector<8x8xf32> to vector<8x1xf32>
    %31 = vector.extract_strided_slice %0 {offsets = [4, 0], sizes = [1, 256], strides = [1, 1]} : vector<8x256xf32> to vector<1x256xf32>
    %32 = vector.broadcast %30 : vector<8x1xf32> to vector<8x256xf32>
    %33 = vector.broadcast %31 : vector<1x256xf32> to vector<8x256xf32>
    %34 = arith.mulf %32, %33 : vector<8x256xf32>
    %35 = arith.addf %29, %34 : vector<8x256xf32>
    %36 = vector.extract_strided_slice %2 {offsets = [0, 5], sizes = [8, 1], strides = [1, 1]} : vector<8x8xf32> to vector<8x1xf32>
    %37 = vector.extract_strided_slice %0 {offsets = [5, 0], sizes = [1, 256], strides = [1, 1]} : vector<8x256xf32> to vector<1x256xf32>
    %38 = vector.broadcast %36 : vector<8x1xf32> to vector<8x256xf32>
    %39 = vector.broadcast %37 : vector<1x256xf32> to vector<8x256xf32>
    %40 = arith.mulf %38, %39 : vector<8x256xf32>
    %41 = arith.addf %35, %40 : vector<8x256xf32>
    %42 = vector.extract_strided_slice %2 {offsets = [0, 6], sizes = [8, 1], strides = [1, 1]} : vector<8x8xf32> to vector<8x1xf32>
    %43 = vector.extract_strided_slice %0 {offsets = [6, 0], sizes = [1, 256], strides = [1, 1]} : vector<8x256xf32> to vector<1x256xf32>
    %44 = vector.broadcast %42 : vector<8x1xf32> to vector<8x256xf32>
    %45 = vector.broadcast %43 : vector<1x256xf32> to vector<8x256xf32>
    %46 = arith.mulf %44, %45 : vector<8x256xf32>
    %47 = arith.addf %41, %46 : vector<8x256xf32>
    %48 = vector.extract_strided_slice %2 {offsets = [0, 7], sizes = [8, 1], strides = [1, 1]} : vector<8x8xf32> to vector<8x1xf32>
    %49 = vector.extract_strided_slice %0 {offsets = [7, 0], sizes = [1, 256], strides = [1, 1]} : vector<8x256xf32> to vector<1x256xf32>
    %50 = vector.broadcast %48 : vector<8x1xf32> to vector<8x256xf32>
    %51 = vector.broadcast %49 : vector<1x256xf32> to vector<8x256xf32>
    %52 = arith.mulf %50, %51 : vector<8x256xf32>
    %53 = arith.addf %47, %52 : vector<8x256xf32>
    %54 = arith.addf %0, %53 : vector<8x256xf32>
    %55 = vector.broadcast %4 : vector<8x1xf32> to vector<8x256xf32>
    %56 = arith.addf %54, %55 : vector<8x256xf32>
    %cst_7 = arith.constant 0.000000e+00 : f32
    %57 = vector.broadcast %cst_7 : f32 to vector<8x256xf32>
    %58 = arith.maximumf %56, %57 : vector<8x256xf32>
    %c1 = arith.constant 1 : index
    %c0_8 = arith.constant 0 : index
    %c0_9 = arith.constant 0 : index
    %59 = vector.load %arg2[%c1, %c0_8, %c0_9] : memref<2x8x8xf32, #tpu.memory_space<vmem>>, vector<1x8x8xf32>
    %60 = vector.shape_cast %59 : vector<1x8x8xf32> to vector<8x8xf32>
    %c1_10 = arith.constant 1 : index
    %c0_11 = arith.constant 0 : index
    %c0_12 = arith.constant 0 : index
    %61 = vector.load %arg3[%c1_10, %c0_11, %c0_12] : memref<2x8x1xf32, #tpu.memory_space<vmem>>, vector<1x8x1xf32>
    %62 = vector.shape_cast %61 : vector<1x8x1xf32> to vector<8x1xf32>
    %cst_13 = arith.constant 0.000000e+00 : f32
    %63 = vector.broadcast %cst_13 : f32 to vector<8x256xf32>
    %64 = vector.extract_strided_slice %60 {offsets = [0, 0], sizes = [8, 1], strides = [1, 1]} : vector<8x8xf32> to vector<8x1xf32>
    %65 = vector.extract_strided_slice %58 {offsets = [0, 0], sizes = [1, 256], strides = [1, 1]} : vector<8x256xf32> to vector<1x256xf32>
    %66 = vector.broadcast %64 : vector<8x1xf32> to vector<8x256xf32>
    %67 = vector.broadcast %65 : vector<1x256xf32> to vector<8x256xf32>
    %68 = arith.mulf %66, %67 : vector<8x256xf32>
    %69 = arith.addf %63, %68 : vector<8x256xf32>
    %70 = vector.extract_strided_slice %60 {offsets = [0, 1], sizes = [8, 1], strides = [1, 1]} : vector<8x8xf32> to vector<8x1xf32>
    %71 = vector.extract_strided_slice %58 {offsets = [1, 0], sizes = [1, 256], strides = [1, 1]} : vector<8x256xf32> to vector<1x256xf32>
    %72 = vector.broadcast %70 : vector<8x1xf32> to vector<8x256xf32>
    %73 = vector.broadcast %71 : vector<1x256xf32> to vector<8x256xf32>
    %74 = arith.mulf %72, %73 : vector<8x256xf32>
    %75 = arith.addf %69, %74 : vector<8x256xf32>
    %76 = vector.extract_strided_slice %60 {offsets = [0, 2], sizes = [8, 1], strides = [1, 1]} : vector<8x8xf32> to vector<8x1xf32>
    %77 = vector.extract_strided_slice %58 {offsets = [2, 0], sizes = [1, 256], strides = [1, 1]} : vector<8x256xf32> to vector<1x256xf32>
    %78 = vector.broadcast %76 : vector<8x1xf32> to vector<8x256xf32>
    %79 = vector.broadcast %77 : vector<1x256xf32> to vector<8x256xf32>
    %80 = arith.mulf %78, %79 : vector<8x256xf32>
    %81 = arith.addf %75, %80 : vector<8x256xf32>
    %82 = vector.extract_strided_slice %60 {offsets = [0, 3], sizes = [8, 1], strides = [1, 1]} : vector<8x8xf32> to vector<8x1xf32>
    %83 = vector.extract_strided_slice %58 {offsets = [3, 0], sizes = [1, 256], strides = [1, 1]} : vector<8x256xf32> to vector<1x256xf32>
    %84 = vector.broadcast %82 : vector<8x1xf32> to vector<8x256xf32>
    %85 = vector.broadcast %83 : vector<1x256xf32> to vector<8x256xf32>
    %86 = arith.mulf %84, %85 : vector<8x256xf32>
    %87 = arith.addf %81, %86 : vector<8x256xf32>
    %88 = vector.extract_strided_slice %60 {offsets = [0, 4], sizes = [8, 1], strides = [1, 1]} : vector<8x8xf32> to vector<8x1xf32>
    %89 = vector.extract_strided_slice %58 {offsets = [4, 0], sizes = [1, 256], strides = [1, 1]} : vector<8x256xf32> to vector<1x256xf32>
    %90 = vector.broadcast %88 : vector<8x1xf32> to vector<8x256xf32>
    %91 = vector.broadcast %89 : vector<1x256xf32> to vector<8x256xf32>
    %92 = arith.mulf %90, %91 : vector<8x256xf32>
    %93 = arith.addf %87, %92 : vector<8x256xf32>
    %94 = vector.extract_strided_slice %60 {offsets = [0, 5], sizes = [8, 1], strides = [1, 1]} : vector<8x8xf32> to vector<8x1xf32>
    %95 = vector.extract_strided_slice %58 {offsets = [5, 0], sizes = [1, 256], strides = [1, 1]} : vector<8x256xf32> to vector<1x256xf32>
    %96 = vector.broadcast %94 : vector<8x1xf32> to vector<8x256xf32>
    %97 = vector.broadcast %95 : vector<1x256xf32> to vector<8x256xf32>
    %98 = arith.mulf %96, %97 : vector<8x256xf32>
    %99 = arith.addf %93, %98 : vector<8x256xf32>
    %100 = vector.extract_strided_slice %60 {offsets = [0, 6], sizes = [8, 1], strides = [1, 1]} : vector<8x8xf32> to vector<8x1xf32>
    %101 = vector.extract_strided_slice %58 {offsets = [6, 0], sizes = [1, 256], strides = [1, 1]} : vector<8x256xf32> to vector<1x256xf32>
    %102 = vector.broadcast %100 : vector<8x1xf32> to vector<8x256xf32>
    %103 = vector.broadcast %101 : vector<1x256xf32> to vector<8x256xf32>
    %104 = arith.mulf %102, %103 : vector<8x256xf32>
    %105 = arith.addf %99, %104 : vector<8x256xf32>
    %106 = vector.extract_strided_slice %60 {offsets = [0, 7], sizes = [8, 1], strides = [1, 1]} : vector<8x8xf32> to vector<8x1xf32>
    %107 = vector.extract_strided_slice %58 {offsets = [7, 0], sizes = [1, 256], strides = [1, 1]} : vector<8x256xf32> to vector<1x256xf32>
    %108 = vector.broadcast %106 : vector<8x1xf32> to vector<8x256xf32>
    %109 = vector.broadcast %107 : vector<1x256xf32> to vector<8x256xf32>
    %110 = arith.mulf %108, %109 : vector<8x256xf32>
    %111 = arith.addf %105, %110 : vector<8x256xf32>
    %112 = arith.addf %58, %111 : vector<8x256xf32>
    %113 = vector.broadcast %62 : vector<8x1xf32> to vector<8x256xf32>
    %114 = arith.addf %112, %113 : vector<8x256xf32>
    %cst_14 = arith.constant 0.000000e+00 : f32
    %115 = vector.broadcast %cst_14 : f32 to vector<8x256xf32>
    %116 = arith.maximumf %114, %115 : vector<8x256xf32>
    %c0_15 = arith.constant 0 : index
    %c0_16 = arith.constant 0 : index
    %117 = vector.load %arg4[%c0_15, %c0_16] : memref<8x256xf32, #tpu.memory_space<vmem>>, vector<8x256xf32>
    tpu.vector_store %arg4[%c0_15, %c0_16], %116 {strides = array<i32>} : memref<8x256xf32, #tpu.memory_space<vmem>>, vector<8x256xf32>,
    return
  }
  func.func @transform_0(%arg0: i32) -> (i32, i32) {
    %c0_i32 = arith.constant 0 : i32
    %c0_i32_0 = arith.constant 0 : i32
    return %c0_i32, %arg0 : i32, i32
  }
  func.func @transform_1(%arg0: i32) -> (i32, i32, i32) {
    %c0_i32 = arith.constant 0 : i32
    %c0_i32_0 = arith.constant 0 : i32
    %c0_i32_1 = arith.constant 0 : i32
    %c0_i32_2 = arith.constant 0 : i32
    return %c0_i32, %c0_i32_0, %c0_i32_1 : i32, i32, i32
  }
  func.func @transform_2(%arg0: i32) -> (i32, i32, i32) {
    %c0_i32 = arith.constant 0 : i32
    %c0_i32_0 = arith.constant 0 : i32
    %c0_i32_1 = arith.constant 0 : i32
    %c0_i32_2 = arith.constant 0 : i32
    return %c0_i32, %c0_i32_0, %c0_i32_1 : i32, i32, i32
  }
  func.func @transform_3(%arg0: i32) -> (i32, i32) {
    %c0_i32 = arith.constant 0 : i32
    %c0_i32_0 = arith.constant 0 : i32
    return %c0_i32, %arg0 : i32, i32
  }
}

</mosaic_0001>

<llo_original>
// kernel: resnet_layer_forward.1
$region0: #{resnet_layer_forward.1}
  #allocation0 [shape = 'u32[]', space=smem, size = 0x4, offset = 0x4, fixed_abs, tag = 'smem constant byte address 0x4 - core index']
  #allocation1 [shape = 'u32[72,128]{1,0:T(1,128)}', space=vmem, size = 0x9000, scoped, tag = 'internal scratch']
  %s0 = inlined_call_operand.vmem [shape: f32[8,512], index: 0, kind: input, shape index: {}]
  %s1 = inlined_call_operand.vmem [shape: f32[2,8,8], index: 1, kind: input, shape index: {}]
  %s2 = inlined_call_operand.vmem [shape: f32[2,8,1], index: 2, kind: input, shape index: {}]
  %s3 = inlined_call_operand.vmem [shape: f32[8,512], index: 3, kind: output, shape index: {}]
  %s4 = sld [smem:[#allocation0]]
  $region45: #{resnet_layer_forward.1} parent=0
    _
  %s6 = ssub.s32 1, %s4
  %s7 = scalar_select 0, %s6, %s4
  loop: start=0, step=1, limit=4
  $region2: #{resnet_layer_forward.1} parent=0 // loop_pre_header
    _
  $region3: #{resnet_layer_forward.1} parent=0 // loop_header
    %s9 = sphi 0, %s13
    %p10 = scmp.ge.s32.totalorder %s9, 4
    %s19 = sphi 0, %s21
    %s22 = sphi 0, %s19
    %s23 = sphi 0, %s22
    %s39 = sphi 0, %s23
    %s43 = sphi 0, %s43
    %s45 = sphi 0, %s43
    %s46 = sphi 0, %s45
    %s60 = sphi 0, %s46
    %s64 = sphi 0, %s64
    %s66 = sphi 0, %s64
    %s67 = sphi 0, %s66
    %s81 = sphi 0, %s67
    %s87 = sphi 0, %s89
    %s90 = sphi 0, %s87
    %s91 = sphi 0, %s90
    %s107 = sphi 0, %s91
  $region4: #{resnet_layer_forward.1} parent=0 // loop_header_branch
    %12 = sbr.rel (%p10) target = $region8
  $region5: #{resnet_layer_forward.1} parent=0 // loop_body
    %s14 = ssub.s32 %s9, 1
    %s15 = ssub.s32 %s9, 2
    %s16 = sadd.s32 %s9, 1
    %s17 = ssub.s32 %s9, %s16
    %p18 = scmp.eq.s32.totalorder %s17, 0
    %s20 = sadd.s32 %s19, 1
    %s21 = scalar_select %p18, %s19, %s20
    %p24 = pneg %p18
    %p25 = scmp.eq.s32.totalorder %s9, 1
    %p26 = por %p24, %p25
    %p27 = scmp.ne.s32.totalorder %s19, %s22
    %p28 = scmp.eq.s32.totalorder %s9, 0
    %p29 = por %p27, %p28
    %p30 = scmp.ne.s32.totalorder %s19, %s22
    %p31 = scmp.eq.s32.totalorder %s14, 1
    %p32 = por %p30, %p31
    %p33 = scmp.ne.s32.totalorder %s22, %s23
    %p34 = scmp.eq.s32.totalorder %s14, 0
    %p35 = por %p33, %p34
    %p36 = scmp.ne.s32.totalorder %s22, %s23
    %p37 = scmp.eq.s32.totalorder %s15, 1
    %p38 = por %p36, %p37
    %p40 = scmp.ne.s32.totalorder %s23, %s39
    %p41 = scmp.eq.s32.totalorder %s15, 0
    %p42 = por %p40, %p41
    %s44 = sadd.s32 %s43, 1
    %p47 = scmp.eq.s32.totalorder %s9, 1
    %p48 = scmp.ne.s32.totalorder %s43, %s45
    %p49 = scmp.eq.s32.totalorder %s9, 0
    %p50 = por %p48, %p49
    %p51 = scmp.ne.s32.totalorder %s43, %s45
    %p52 = scmp.eq.s32.totalorder %s14, 1
    %p53 = por %p51, %p52
    %p54 = scmp.ne.s32.totalorder %s45, %s46
    %p55 = scmp.eq.s32.totalorder %s14, 0
    %p56 = por %p54, %p55
    %p57 = scmp.ne.s32.totalorder %s45, %s46
    %p58 = scmp.eq.s32.totalorder %s15, 1
    %p59 = por %p57, %p58
    %p61 = scmp.ne.s32.totalorder %s46, %s60
    %p62 = scmp.eq.s32.totalorder %s15, 0
    %p63 = por %p61, %p62
    %s65 = sadd.s32 %s64, 1
    %p68 = scmp.eq.s32.totalorder %s9, 1
    %p69 = scmp.ne.s32.totalorder %s64, %s66
    %p70 = scmp.eq.s32.totalorder %s9, 0
    %p71 = por %p69, %p70
    %p72 = scmp.ne.s32.totalorder %s64, %s66
    %p73 = scmp.eq.s32.totalorder %s14, 1
    %p74 = por %p72, %p73
    %p75 = scmp.ne.s32.totalorder %s66, %s67
    %p76 = scmp.eq.s32.totalorder %s14, 0
    %p77 = por %p75, %p76
    %p78 = scmp.ne.s32.totalorder %s66, %s67
    %p79 = scmp.eq.s32.totalorder %s15, 1
    %p80 = por %p78, %p79
    %p82 = scmp.ne.s32.totalorder %s67, %s81
    %p83 = scmp.eq.s32.totalorder %s15, 0
    %p84 = por %p82, %p83
    %s85 = ssub.s32 %s9, %s16
    %p86 = scmp.eq.s32.totalorder %s85, 0
    %s88 = sadd.s32 %s87, 1
    %s89 = scalar_select %p86, %s87, %s88
    %p92 = pneg %p86
    %p93 = scmp.eq.s32.totalorder %s9, 1
    %p94 = por %p92, %p93
    %p95 = scmp.ne.s32.totalorder %s87, %s90
    %p96 = scmp.eq.s32.totalorder %s9, 0
    %p97 = por %p95, %p96
    %p98 = scmp.ne.s32.totalorder %s87, %s90
    %p99 = scmp.eq.s32.totalorder %s14, 1
    %p100 = por %p98, %p99
    %p101 = scmp.ne.s32.totalorder %s90, %s91
    %p102 = scmp.eq.s32.totalorder %s14, 0
    %p103 = por %p101, %p102
    %p104 = scmp.ne.s32.totalorder %s90, %s91
    %p105 = scmp.eq.s32.totalorder %s15, 1
    %p106 = por %p104, %p105
    %p108 = scmp.ne.s32.totalorder %s91, %s107
    %p109 = scmp.eq.s32.totalorder %s15, 0
    %p110 = por %p108, %p109
    %p111 = scmp.le.s32.totalorder 1, %s9
    %p112 = scmp.lt.s32.totalorder %s9, 3
    %p113 = pnand %p111, %p112
    %p114 = pneg %p113
    // Predicated region
    $region9: #{resnet_layer_forward.1} parent=5 // pred_check
      _
    $region10: #{resnet_layer_forward.1} parent=5 // pred_check_branch
      %116 = sbr.rel (%p113) target = $region12
    $region11: #{resnet_layer_forward.1} parent=5 // pred_region
      %s117 = ssub.s32 %s9, 1
      // Predicated region
      $region13: #{resnet_layer_forward.1} parent=11 // pred_check
        %p118 = pneg %p56
      $region14: #{resnet_layer_forward.1} parent=11 // pred_check_branch
        %120 = sbr.rel (%p118) target = $region16
      $region15: #{resnet_layer_forward.1} parent=11 // pred_region
        _
      $region16: #{resnet_layer_forward.1} parent=11 // pred_fallthru
        _
      // Predicated region
      $region17: #{resnet_layer_forward.1} parent=11 // pred_check
        %p121 = pneg %p77
      $region18: #{resnet_layer_forward.1} parent=11 // pred_check_branch
        %123 = sbr.rel (%p121) target = $region20
      $region19: #{resnet_layer_forward.1} parent=11 // pred_region
        _
      $region20: #{resnet_layer_forward.1} parent=11 // pred_fallthru
        _
    $region12: #{resnet_layer_forward.1} parent=5 // pred_fallthru
      _
    %p124 = scmp.lt.s32.totalorder %s9, 2
    // Predicated region
    $region21: #{resnet_layer_forward.1} parent=5 // pred_check
      %p125 = pneg %p124
    $region22: #{resnet_layer_forward.1} parent=5 // pred_check_branch
      %127 = sbr.rel (%p125) target = $region24
    $region23: #{resnet_layer_forward.1} parent=5 // pred_region
      // Predicated region
      $region25: #{resnet_layer_forward.1} parent=23 // pred_check
        %p128 = pneg %p29
      $region26: #{resnet_layer_forward.1} parent=23 // pred_check_branch
        %130 = sbr.rel (%p128) target = $region28
      $region27: #{resnet_layer_forward.1} parent=23 // pred_region
        %s131 = smul.u32 2, %s9
        %p132 = scmp.lt.s32.totalorder %s131, 3
        %s133 = scalar_select %p132, %s131, 3
        %s134 = smul.addr %s133, 8
        %s135 = scalar_lea.vmem %s0, %s134
        %s136 = smul.u32 2, %s9
      $region28: #{resnet_layer_forward.1} parent=23 // pred_fallthru
        _
    $region24: #{resnet_layer_forward.1} parent=5 // pred_fallthru
      _
    %p137 = scmp.le.s32.totalorder 1, %s9
    %p138 = scmp.lt.s32.totalorder %s9, 3
    %p139 = pnand %p137, %p138
    %p140 = pneg %p139
    // Predicated region
    $region29: #{resnet_layer_forward.1} parent=5 // pred_check
      _
    $region30: #{resnet_layer_forward.1} parent=5 // pred_check_branch
      %142 = sbr.rel (%p139) target = $region32
    $region31: #{resnet_layer_forward.1} parent=5 // pred_region
      %s143 = ssub.s32 %s9, 1
      %s144 = smul.u32 2, %s14
      %p145 = scmp.lt.s32.totalorder %s144, 3
      %s146 = scalar_select %p145, %s144, 3
      %s147 = smul.addr %s146, 8
      %s148 = scalar_lea.vmem %s0, %s147
      %p149 = pneg %p35
      %p150 = pneg %p32
      %p151 = pneg %p56
      %p152 = pneg %p53
      %p153 = pneg %p77
      %p154 = pneg %p74
      %p155 = pneg %p103
      %p156 = pneg %p100
      %s157 = smul.u32 2, %s14
      %p158 = scmp.lt.s32.totalorder %s157, 3
      %s159 = scalar_select %p158, %s157, 3
      %s160 = smul.addr %s159, 8
      %s161 = scalar_lea.vmem %s3, %s160
      %s162 = smul.u32 2, %s14
      %p163 = scmp.lt.s32.totalorder %s162, 3
      %s164 = scalar_select %p163, %s162, 3
      %s165 = smul.addr %s164, 8
      %s166 = scalar_lea.vmem %s0, %s165
      %s167 = smul.u32 2, %s14
      %s168 = smul.u32 2, %s14
      %p169 = scmp.lt.s32.totalorder %s168, 3
      %s170 = scalar_select %p169, %s168, 3
      %s171 = smul.addr %s170, 8
      %s172 = scalar_lea.vmem %s3, %s171
      %s173 = smul.u32 2, %s14
      %v174 = vld [vmem:[%s166] sm:$0xff]
      %v175 = vld [vmem:[%s166 + $0x8] sm:$0xff]
      %v176 = vld [vmem:[%s1] sm:$0xff]
      %v177 = vld [vmem:[%s2] sm:$0xff]
      %179 = vset.pattern.permute.xlu0 0
      %180 = vperm.xlu0 %179, %v176
      %v181 = vpop.permute.xlu0 %180
      %v183 = vperm.slane %v174, 0
      %v184 = vperm.slane %v175, 0
      %v185 = vmul.f32 %v181, %v183
      %v186 = vmul.f32 %v181, %v184
      %v187 = vadd.f32 %v185, 0.0
      %v188 = vadd.f32 %v186, 0.0
      %189 = vset.pattern.permute.xlu0 1
      %190 = vperm.xlu0 %189, %v176
      %v191 = vpop.permute.xlu0 %190
      %v193 = vperm.slane %v174, 1
      %v194 = vperm.slane %v175, 1
      %v195 = vmul.f32 %v191, %v193
      %v196 = vmul.f32 %v191, %v194
      %v197 = vadd.f32 %v187, %v195
      %v198 = vadd.f32 %v188, %v196
      %199 = vset.pattern.permute.xlu0 2
      %200 = vperm.xlu0 %199, %v176
      %v201 = vpop.permute.xlu0 %200
      %v203 = vperm.slane %v174, 2
      %v204 = vperm.slane %v175, 2
      %v205 = vmul.f32 %v201, %v203
      %v206 = vmul.f32 %v201, %v204
      %v207 = vadd.f32 %v197, %v205
      %v208 = vadd.f32 %v198, %v206
      %209 = vset.pattern.permute.xlu0 3
      %210 = vperm.xlu0 %209, %v176
      %v211 = vpop.permute.xlu0 %210
      %v213 = vperm.slane %v174, 3
      %v214 = vperm.slane %v175, 3
      %v215 = vmul.f32 %v211, %v213
      %v216 = vmul.f32 %v211, %v214
      %v217 = vadd.f32 %v207, %v215
      %v218 = vadd.f32 %v208, %v216
      %219 = vset.pattern.permute.xlu0 4
      %220 = vperm.xlu0 %219, %v176
      %v221 = vpop.permute.xlu0 %220
      %v223 = vperm.slane %v174, 4
      %v224 = vperm.slane %v175, 4
      %v225 = vmul.f32 %v221, %v223
      %v226 = vmul.f32 %v221, %v224
      %v227 = vadd.f32 %v217, %v225
      %v228 = vadd.f32 %v218, %v226
      %229 = vset.pattern.permute.xlu0 5
      %230 = vperm.xlu0 %229, %v176
      %v231 = vpop.permute.xlu0 %230
      %v233 = vperm.slane %v174, 5
      %v234 = vperm.slane %v175, 5
      %v235 = vmul.f32 %v231, %v233
      %v236 = vmul.f32 %v231, %v234
      %v237 = vadd.f32 %v227, %v235
      %v238 = vadd.f32 %v228, %v236
      %239 = vset.pattern.permute.xlu0 6
      %240 = vperm.xlu0 %239, %v176
      %v241 = vpop.permute.xlu0 %240
      %v243 = vperm.slane %v174, 6
      %v244 = vperm.slane %v175, 6
      %v245 = vmul.f32 %v241, %v243
      %v246 = vmul.f32 %v241, %v244
      %v247 = vadd.f32 %v237, %v245
      %v248 = vadd.f32 %v238, %v246
      %249 = vset.pattern.permute.xlu0 7
      %250 = vperm.xlu0 %249, %v176
      %v251 = vpop.permute.xlu0 %250
      %v253 = vperm.slane %v174, 7
      %v254 = vperm.slane %v175, 7
      %v255 = vmul.f32 %v251, %v253
      %v256 = vmul.f32 %v251, %v254
      %v257 = vadd.f32 %v247, %v255
      %v258 = vadd.f32 %v248, %v256
      %v259 = vadd.f32 %v174, %v257
      %v260 = vadd.f32 %v175, %v258
      %262 = vset.pattern.permute.xlu0 0
      %263 = vperm.xlu0 %262, %v177
      %v264 = vpop.permute.xlu0 %263
      %v266 = vadd.f32 %v259, %v264
      %v267 = vadd.f32 %v260, %v264
      %v268 = vmax.f32 %v266, 0.0
      %v269 = vmax.f32 %v267, 0.0
      %s270 = scalar_lea.vmem %s1, 8
      %v271 = vld [vmem:[%s270] sm:$0xff]
      %s272 = scalar_lea.vmem %s2, 8
      %v273 = vld [vmem:[%s272] sm:$0xff]
      %275 = vset.pattern.permute.xlu0 0
      %276 = vperm.xlu0 %275, %v271
      %v277 = vpop.permute.xlu0 %276
      %v279 = vperm.slane %v268, 0
      %v280 = vperm.slane %v269, 0
      %v281 = vmul.f32 %v277, %v279
      %v282 = vmul.f32 %v277, %v280
      %v283 = vadd.f32 %v281, 0.0
      %v284 = vadd.f32 %v282, 0.0
      %285 = vset.pattern.permute.xlu0 1
      %286 = vperm.xlu0 %285, %v271
      %v287 = vpop.permute.xlu0 %286
      %v289 = vperm.slane %v268, 1
      %v290 = vperm.slane %v269, 1
      %v291 = vmul.f32 %v287, %v289
      %v292 = vmul.f32 %v287, %v290
      %v293 = vadd.f32 %v283, %v291
      %v294 = vadd.f32 %v284, %v292
      %295 = vset.pattern.permute.xlu0 2
      %296 = vperm.xlu0 %295, %v271
      %v297 = vpop.permute.xlu0 %296
      %v299 = vperm.slane %v268, 2
      %v300 = vperm.slane %v269, 2
      %v301 = vmul.f32 %v297, %v299
      %v302 = vmul.f32 %v297, %v300
      %v303 = vadd.f32 %v293, %v301
      %v304 = vadd.f32 %v294, %v302
      %305 = vset.pattern.permute.xlu0 3
      %306 = vperm.xlu0 %305, %v271
      %v307 = vpop.permute.xlu0 %306
      %v309 = vperm.slane %v268, 3
      %v310 = vperm.slane %v269, 3
      %v311 = vmul.f32 %v307, %v309
      %v312 = vmul.f32 %v307, %v310
      %v313 = vadd.f32 %v303, %v311
      %v314 = vadd.f32 %v304, %v312
      %315 = vset.pattern.permute.xlu0 4
      %316 = vperm.xlu0 %315, %v271
      %v317 = vpop.permute.xlu0 %316
      %v319 = vperm.slane %v268, 4
      %v320 = vperm.slane %v269, 4
      %v321 = vmul.f32 %v317, %v319
      %v322 = vmul.f32 %v317, %v320
      %v323 = vadd.f32 %v313, %v321
      %v324 = vadd.f32 %v314, %v322
      %325 = vset.pattern.permute.xlu0 5
      %326 = vperm.xlu0 %325, %v271
      %v327 = vpop.permute.xlu0 %326
      %v329 = vperm.slane %v268, 5
      %v330 = vperm.slane %v269, 5
      %v331 = vmul.f32 %v327, %v329
      %v332 = vmul.f32 %v327, %v330
      %v333 = vadd.f32 %v323, %v331
      %v334 = vadd.f32 %v324, %v332
      %335 = vset.pattern.permute.xlu0 6
      %336 = vperm.xlu0 %335, %v271
      %v337 = vpop.permute.xlu0 %336
      %v339 = vperm.slane %v268, 6
      %v340 = vperm.slane %v269, 6
      %v341 = vmul.f32 %v337, %v339
      %v342 = vmul.f32 %v337, %v340
      %v343 = vadd.f32 %v333, %v341
      %v344 = vadd.f32 %v334, %v342
      %345 = vset.pattern.permute.xlu0 7
      %346 = vperm.xlu0 %345, %v271
      %v347 = vpop.permute.xlu0 %346
      %v349 = vperm.slane %v268, 7
      %v350 = vperm.slane %v269, 7
      %v351 = vmul.f32 %v347, %v349
      %v352 = vmul.f32 %v347, %v350
      %v353 = vadd.f32 %v343, %v351
      %v354 = vadd.f32 %v344, %v352
      %v355 = vadd.f32 %v268, %v353
      %v356 = vadd.f32 %v269, %v354
      %358 = vset.pattern.permute.xlu0 0
      %359 = vperm.xlu0 %358, %v273
      %v360 = vpop.permute.xlu0 %359
      %v362 = vadd.f32 %v355, %v360
      %v363 = vadd.f32 %v356, %v360
      %v364 = vmax.f32 %v362, 0.0
      %v365 = vmax.f32 %v363, 0.0
      %366 = vst [vmem:[%s172] sm:$0xff] %v364
      %367 = vst [vmem:[%s172 + $0x8] sm:$0xff] %v365
      %s368 = smul.u32 2, %s14
      %p369 = scmp.lt.s32.totalorder %s368, 3
      %s370 = scalar_select %p369, %s368, 3
      %s371 = smul.addr %s370, 8
      %s372 = scalar_lea.vmem %s3, %s371
      // Predicated region
      $region33: #{resnet_layer_forward.1} parent=31 // pred_check
        %p373 = pneg %p100
      $region34: #{resnet_layer_forward.1} parent=31 // pred_check_branch
        %375 = sbr.rel (%p373) target = $region36
      $region35: #{resnet_layer_forward.1} parent=31 // pred_region
        %s376 = smul.u32 2, %s14
      $region36: #{resnet_layer_forward.1} parent=31 // pred_fallthru
        _
    $region32: #{resnet_layer_forward.1} parent=5 // pred_fallthru
      _
    %p377 = scmp.le.s32.totalorder 2, %s9
    // Predicated region
    $region37: #{resnet_layer_forward.1} parent=5 // pred_check
      %p378 = pneg %p377
    $region38: #{resnet_layer_forward.1} parent=5 // pred_check_branch
      %380 = sbr.rel (%p378) target = $region40
    $region39: #{resnet_layer_forward.1} parent=5 // pred_region
      %s381 = ssub.s32 %s9, 2
      // Predicated region
      $region41: #{resnet_layer_forward.1} parent=39 // pred_check
        %p382 = pneg %p106
      $region42: #{resnet_layer_forward.1} parent=39 // pred_check_branch
        %384 = sbr.rel (%p382) target = $region44
      $region43: #{resnet_layer_forward.1} parent=39 // pred_region
        %s385 = smul.u32 2, %s15
        %p386 = scmp.lt.s32.totalorder %s385, 3
        %s387 = scalar_select %p386, %s385, 3
        %s388 = smul.addr %s387, 8
        %s389 = scalar_lea.vmem %s3, %s388
      $region44: #{resnet_layer_forward.1} parent=39 // pred_fallthru
        _
    $region40: #{resnet_layer_forward.1} parent=5 // pred_fallthru
      _
  $region6: #{resnet_layer_forward.1} parent=0 // loop_footer
    %s13 = sadd.s32 1, %s9
  $region7: #{resnet_layer_forward.1} parent=0 // loop_footer_branch
    %8 = sbr.rel target = $region3
  $region8: #{resnet_layer_forward.1} parent=0 // loop_exit
    _

</llo_original>
